<compile_context>
chip_gen: v7x
topology: tpu7x:2x2x1
jax: 0.10.0
libtpu: 0.0.40
codegen_flags: <defaults>
</compile_context>

<pallas_src>
import functools

import jax
import jax.numpy as jnp
from jax.experimental import pallas as pl
from jax.experimental.pallas import tpu as pltpu


def _round_up(n, m):
    return ((n + m - 1) // m) * m


def _win(offset, size, stride):
    """Window slice helper: strided pl.ds (contiguous when stride == 1)."""
    if stride == 1:
        return pl.ds(offset, size)
    return pl.ds(offset, size, stride=stride)


def _pool_tiled_kernel(x_ref, o_ref, *, k):
    # stride == kernel_size path.
    # x_ref: (1, kd, h, kh, kw, w, B)  -- one depth window, spatial axes
    #        pre-factored into (out, k); (w, B) are the (sublane, lane) dims.
    # o_ref: (1, h, w, B) output plane for this depth index.
    acc = None
    for dz in range(k):            # depth offset within the window
        for dy in range(k):        # height offset
            for dx in range(k):    # width offset
                v = x_ref[0, dz, :, dy, dx, :, :]          # (h, w, B), contiguous tiles
                acc = v if acc is None else jnp.maximum(acc, v)
    # Single dense store of the whole plane; cast to float32 (torch.zeros) here.
    o_ref[0] = acc.astype(o_ref.dtype)


def _pool_strided_kernel(x_ref, o_ref, *, k, s, h_out, w_out):
    # General-stride fallback (overlapping / skipping windows).
    # x_ref: (D, H, W, B) depth-resident input; o_ref: (1, h, w, B).
    d0 = pl.program_id(0) * s
    acc = None
    for dz in range(k):
        for dy in range(k):
            for dw in range(k):
                v = x_ref[d0 + dz, _win(dy, h_out, s), _win(dw, w_out, s), :]
                acc = v if acc is None else jnp.maximum(acc, v)
    o_ref[0] = acc.astype(o_ref.dtype)


def maxpool3d_mps(x, kernel_size, stride=None, padding=0):
    """Pallas TPU equivalent of MaxPool3dMPS.forward.  x: (N, C, D, H, W)."""
    if x.ndim != 5:
        raise ValueError("Expected 5D tensor as input")
    stride = stride or kernel_size
    if padding != 0:
        # TODO(synk): the torch module uses `padding` only in the size formula
        # and never pads the data (windows are edge-clipped); only padding == 0
        # is supported here.
        raise NotImplementedError("maxpool3d_mps only supports padding == 0")
    if kernel_size < 1 or stride < 1:
        raise ValueError("kernel_size and stride must be >= 1")

    N, C, D, H, W = x.shape
    k, s = kernel_size, stride
    d = (D - k) // s + 1
    h = (H - k) // s + 1
    w = (W - k) // s + 1
    if d < 1 or h < 1 or w < 1:
        raise ValueError("pooling window larger than the input volume")
    B = N * C
    itemsize = jnp.dtype(x.dtype).itemsize
    lane = _round_up(B, 128)

    params = {"dimension_semantics": ("parallel",)}

    if s == k:
        # Non-overlapping windows (module default): pre-factor every spatial
        # axis into (out, k) so the kernel needs no strided VMEM access.
        x_b = x.reshape(B, D, H, W)
        if (d * k, h * k, w * k) != (D, H, W):
            x_b = x_b[:, : d * k, : h * k, : w * k]
        x_r = x_b.reshape(B, d, k, h, k, w, k)
        # (B, d, kd, h, kh, w, kw) -> (d, kd, h, kh, kw, w, B): all pooled axes
        # become major dims; w on sublanes, B = N*C on lanes.
        x_t = jnp.transpose(x_r, (1, 2, 3, 4, 6, 5, 0))

        in_block = (1, k, h, k, k, w, B)
        in_bytes = (k * h * k * k) * _round_up(w, 8) * lane * itemsize
        out_bytes = h * _round_up(w, 8) * lane * 4
        needed = 2 * in_bytes + 2 * out_bytes + (4 << 20)
        if needed > (32 << 20):
            params["vmem_limit_bytes"] = int(min(needed, 100 << 20))

        kernel = functools.partial(_pool_tiled_kernel, k=k)
        out_t = pl.pallas_call(
            kernel,
            out_shape=jax.ShapeDtypeStruct((d, h, w, B), jnp.float32),
            grid_spec=pltpu.PrefetchScalarGridSpec(
                num_scalar_prefetch=0,
                grid=(d,),
                in_specs=[pl.BlockSpec(in_block,
                                       lambda i: (i, 0, 0, 0, 0, 0, 0))],
                out_specs=pl.BlockSpec((1, h, w, B), lambda i: (i, 0, 0, 0)),
            ),
            compiler_params=pltpu.CompilerParams(**params),
        )(x_t)
    else:
        # General stride: keep the whole depth resident, strided window loads.
        # TODO(synk): window the depth axis for the general-stride case too
        # (overlapping depth windows) instead of keeping the full volume in VMEM.
        x_t = jnp.transpose(x.reshape(B, D, H, W), (1, 2, 3, 0))   # (D, H, W, B)

        in_bytes = D * H * _round_up(W, 8) * lane * itemsize
        out_bytes = h * _round_up(w, 8) * lane * 4
        needed = 2 * in_bytes + 2 * out_bytes + (4 << 20)
        if needed > (32 << 20):
            params["vmem_limit_bytes"] = int(min(needed, 100 << 20))

        kernel = functools.partial(_pool_strided_kernel, k=k, s=s,
                                   h_out=h, w_out=w)
        out_t = pl.pallas_call(
            kernel,
            out_shape=jax.ShapeDtypeStruct((d, h, w, B), jnp.float32),
            grid_spec=pltpu.PrefetchScalarGridSpec(
                num_scalar_prefetch=0,
                grid=(d,),
                in_specs=[pl.BlockSpec((D, H, W, B), lambda i: (0, 0, 0, 0))],
                out_specs=pl.BlockSpec((1, h, w, B), lambda i: (i, 0, 0, 0)),
            ),
            compiler_params=pltpu.CompilerParams(**params),
        )(x_t)

    # (d, h, w, B) -> (N, C, d, h, w); float32 output matches torch.zeros.
    return jnp.transpose(out_t, (3, 0, 1, 2)).reshape(N, C, d, h, w)


if __name__ == "__main__":
    key = jax.random.PRNGKey(0)
    N, C, D, H, W = 2, 4, 16, 16, 16
    kernel_size, stride, padding = 2, 2, 0
    x = jax.random.normal(key, (N, C, D, H, W), dtype=jnp.float32)

    out = maxpool3d_mps(x, kernel_size, stride=stride, padding=padding)
    out = jax.block_until_ready(out)

    # Pure-JAX reference for correctness.
    ref = jax.lax.reduce_window(
        x.astype(jnp.float32), -jnp.inf, jax.lax.max,
        window_dimensions=(1, 1, kernel_size, kernel_size, kernel_size),
        window_strides=(1, 1, stride, stride, stride),
        padding="VALID")

    d = (D - kernel_size) // stride + 1
    h = (H - kernel_size) // stride + 1
    w = (W - kernel_size) // stride + 1
    assert out.shape == (N, C, d, h, w), out.shape
    assert out.dtype == jnp.float32
    assert jnp.allclose(out, ref), "mismatch vs reference max pool"

    print("KERNEL_OK")
</pallas_src>

<mosaic_0001>
module attributes {stable_mosaic.version = 11 : i64} {
  func.func @_pool_tiled_kernel(%arg0: i32, %arg1: memref<1x2x8x2x2x8x8xf32, #tpu.memory_space<vmem>>, %arg2: memref<1x8x8x8xf32, #tpu.memory_space<vmem>>) attributes {dimension_semantics = [#tpu.dimension_semantics<parallel>], iteration_bounds = array<i64: 8>, scalar_prefetch = 0 : i64, scratch_operands = 0 : i64, tpu.core_type = #tpu.core_type<tc>, window_params = [{transform_indices = @transform_0, window_bounds = array<i64: 1, 2, 8, 2, 2, 8, 8>}, {transform_indices = @transform_1, window_bounds = array<i64: 1, 8, 8, 8>}]} {
    %c0 = arith.constant 0 : index
    %c0_0 = arith.constant 0 : index
    %c0_1 = arith.constant 0 : index
    %c0_2 = arith.constant 0 : index
    %c0_3 = arith.constant 0 : index
    %c0_4 = arith.constant 0 : index
    %c0_5 = arith.constant 0 : index
    %0 = vector.load %arg1[%c0, %c0_0, %c0_1, %c0_2, %c0_3, %c0_4, %c0_5] : memref<1x2x8x2x2x8x8xf32, #tpu.memory_space<vmem>>, vector<1x1x8x1x1x8x8xf32>
    %1 = vector.shape_cast %0 : vector<1x1x8x1x1x8x8xf32> to vector<8x8x8xf32>
    %c0_6 = arith.constant 0 : index
    %c0_7 = arith.constant 0 : index
    %c0_8 = arith.constant 0 : index
    %c0_9 = arith.constant 0 : index
    %c1 = arith.constant 1 : index
    %c0_10 = arith.constant 0 : index
    %c0_11 = arith.constant 0 : index
    %2 = vector.load %arg1[%c0_6, %c0_7, %c0_8, %c0_9, %c1, %c0_10, %c0_11] : memref<1x2x8x2x2x8x8xf32, #tpu.memory_space<vmem>>, vector<1x1x8x1x1x8x8xf32>
    %3 = vector.shape_cast %2 : vector<1x1x8x1x1x8x8xf32> to vector<8x8x8xf32>
    %4 = arith.maximumf %1, %3 : vector<8x8x8xf32>
    %c0_12 = arith.constant 0 : index
    %c0_13 = arith.constant 0 : index
    %c0_14 = arith.constant 0 : index
    %c1_15 = arith.constant 1 : index
    %c0_16 = arith.constant 0 : index
    %c0_17 = arith.constant 0 : index
    %c0_18 = arith.constant 0 : index
    %5 = vector.load %arg1[%c0_12, %c0_13, %c0_14, %c1_15, %c0_16, %c0_17, %c0_18] : memref<1x2x8x2x2x8x8xf32, #tpu.memory_space<vmem>>, vector<1x1x8x1x1x8x8xf32>
    %6 = vector.shape_cast %5 : vector<1x1x8x1x1x8x8xf32> to vector<8x8x8xf32>
    %7 = arith.maximumf %4, %6 : vector<8x8x8xf32>
    %c0_19 = arith.constant 0 : index
    %c0_20 = arith.constant 0 : index
    %c0_21 = arith.constant 0 : index
    %c1_22 = arith.constant 1 : index
    %c1_23 = arith.constant 1 : index
    %c0_24 = arith.constant 0 : index
    %c0_25 = arith.constant 0 : index
    %8 = vector.load %arg1[%c0_19, %c0_20, %c0_21, %c1_22, %c1_23, %c0_24, %c0_25] : memref<1x2x8x2x2x8x8xf32, #tpu.memory_space<vmem>>, vector<1x1x8x1x1x8x8xf32>
    %9 = vector.shape_cast %8 : vector<1x1x8x1x1x8x8xf32> to vector<8x8x8xf32>
    %10 = arith.maximumf %7, %9 : vector<8x8x8xf32>
    %c0_26 = arith.constant 0 : index
    %c1_27 = arith.constant 1 : index
    %c0_28 = arith.constant 0 : index
    %c0_29 = arith.constant 0 : index
    %c0_30 = arith.constant 0 : index
    %c0_31 = arith.constant 0 : index
    %c0_32 = arith.constant 0 : index
    %11 = vector.load %arg1[%c0_26, %c1_27, %c0_28, %c0_29, %c0_30, %c0_31, %c0_32] : memref<1x2x8x2x2x8x8xf32, #tpu.memory_space<vmem>>, vector<1x1x8x1x1x8x8xf32>
    %12 = vector.shape_cast %11 : vector<1x1x8x1x1x8x8xf32> to vector<8x8x8xf32>
    %13 = arith.maximumf %10, %12 : vector<8x8x8xf32>
    %c0_33 = arith.constant 0 : index
    %c1_34 = arith.constant 1 : index
    %c0_35 = arith.constant 0 : index
    %c0_36 = arith.constant 0 : index
    %c1_37 = arith.constant 1 : index
    %c0_38 = arith.constant 0 : index
    %c0_39 = arith.constant 0 : index
    %14 = vector.load %arg1[%c0_33, %c1_34, %c0_35, %c0_36, %c1_37, %c0_38, %c0_39] : memref<1x2x8x2x2x8x8xf32, #tpu.memory_space<vmem>>, vector<1x1x8x1x1x8x8xf32>
    %15 = vector.shape_cast %14 : vector<1x1x8x1x1x8x8xf32> to vector<8x8x8xf32>
    %16 = arith.maximumf %13, %15 : vector<8x8x8xf32>
    %c0_40 = arith.constant 0 : index
    %c1_41 = arith.constant 1 : index
    %c0_42 = arith.constant 0 : index
    %c1_43 = arith.constant 1 : index
    %c0_44 = arith.constant 0 : index
    %c0_45 = arith.constant 0 : index
    %c0_46 = arith.constant 0 : index
    %17 = vector.load %arg1[%c0_40, %c1_41, %c0_42, %c1_43, %c0_44, %c0_45, %c0_46] : memref<1x2x8x2x2x8x8xf32, #tpu.memory_space<vmem>>, vector<1x1x8x1x1x8x8xf32>
    %18 = vector.shape_cast %17 : vector<1x1x8x1x1x8x8xf32> to vector<8x8x8xf32>
    %19 = arith.maximumf %16, %18 : vector<8x8x8xf32>
    %c0_47 = arith.constant 0 : index
    %c1_48 = arith.constant 1 : index
    %c0_49 = arith.constant 0 : index
    %c1_50 = arith.constant 1 : index
    %c1_51 = arith.constant 1 : index
    %c0_52 = arith.constant 0 : index
    %c0_53 = arith.constant 0 : index
    %20 = vector.load %arg1[%c0_47, %c1_48, %c0_49, %c1_50, %c1_51, %c0_52, %c0_53] : memref<1x2x8x2x2x8x8xf32, #tpu.memory_space<vmem>>, vector<1x1x8x1x1x8x8xf32>
    %21 = vector.shape_cast %20 : vector<1x1x8x1x1x8x8xf32> to vector<8x8x8xf32>
    %22 = arith.maximumf %19, %21 : vector<8x8x8xf32>
    %c0_54 = arith.constant 0 : index
    %c0_55 = arith.constant 0 : index
    %c0_56 = arith.constant 0 : index
    %c0_57 = arith.constant 0 : index
    %23 = vector.load %arg2[%c0_54, %c0_55, %c0_56, %c0_57] : memref<1x8x8x8xf32, #tpu.memory_space<vmem>>, vector<1x8x8x8xf32>
    %24 = vector.shape_cast %23 : vector<1x8x8x8xf32> to vector<8x8x8xf32>
    %25 = vector.shape_cast %22 : vector<8x8x8xf32> to vector<1x8x8x8xf32>
    tpu.vector_store %arg2[%c0_54, %c0_55, %c0_56, %c0_57], %25 {strides = array<i32>} : memref<1x8x8x8xf32, #tpu.memory_space<vmem>>, vector<1x8x8x8xf32>,
    return
  }
  func.func @transform_0(%arg0: i32) -> (i32, i32, i32, i32, i32, i32, i32) {
    %c0_i32 = arith.constant 0 : i32
    %c0_i32_0 = arith.constant 0 : i32
    %c0_i32_1 = arith.constant 0 : i32
    %c0_i32_2 = arith.constant 0 : i32
    %c0_i32_3 = arith.constant 0 : i32
    %c0_i32_4 = arith.constant 0 : i32
    %c0_i32_5 = arith.constant 0 : i32
    return %arg0, %c0_i32, %c0_i32_0, %c0_i32_1, %c0_i32_2, %c0_i32_3, %c0_i32_4 : i32, i32, i32, i32, i32, i32, i32
  }
  func.func @transform_1(%arg0: i32) -> (i32, i32, i32, i32) {
    %c0_i32 = arith.constant 0 : i32
    %c0_i32_0 = arith.constant 0 : i32
    %c0_i32_1 = arith.constant 0 : i32
    %c0_i32_2 = arith.constant 0 : i32
    return %arg0, %c0_i32, %c0_i32_0, %c0_i32_1 : i32, i32, i32, i32
  }
}

</mosaic_0001>

<llo_original>
// kernel: tpu_custom_call.1
$region0: #{tpu_custom_call.1}
  #allocation0 [shape = 'u32[]', space=smem, size = 0x4, offset = 0x4, fixed_abs, tag = 'smem constant byte address 0x4 - core index']
  #allocation1 [shape = 'u32[144,128]{1,0:T(1,128)}', space=vmem, size = 0x12000, scoped, tag = 'internal scratch']
  %s0 = inlined_call_operand.hbm [shape: f32[8,2,8,2,2,8,8], index: 0, kind: input, shape index: {}]
  %s1 = inlined_call_operand.hbm [shape: f32[8,8,8,8], index: 1, kind: output, shape index: {}]
  %s2 = sld [smem:[#allocation0]]
  $region41: #{tpu_custom_call.1} parent=0
    _
  %s4 = ssub.s32 1, %s2
  %s5 = scalar_select 0, %s4, %s2
  $region1: #{tpu_custom_call.1} parent=0
    #allocation2 [shape = 'u8[524288]{0}', space=vmem, size = 0x80000, scoped, tag = 'input window, operand 0']
    #allocation3 [shape = 's32[2]{0}', space=sflag, size = 0x8, scoped, tag = 'scoped memory for tpu_custom_call.1']
    #allocation4 [shape = 's32[2]{0}', space=sflag, size = 0x8, scoped, tag = 'scoped memory for tpu_custom_call.1']
    #allocation5 [shape = 'u8[65536]{0}', space=vmem, size = 0x10000, scoped, tag = 'output window, operand 0']
    %6 = vsyncpa [#allocation3], 0
    %s7 = scalar_lea.sflag [#allocation3], 1
    %8 = vsyncpa %s7, 0
    %9 = vsyncpa [#allocation4], 0
    %s10 = scalar_lea.sflag [#allocation4], 1
    %11 = vsyncpa %s10, 0
    loop: start=0, step=1, limit=10
    $region2: #{tpu_custom_call.1} parent=1 // loop_pre_header
      _
    $region3: #{tpu_custom_call.1} parent=1 // loop_header
      %s13 = sphi 0, %s17
      %p14 = scmp.ge.s32.totalorder %s13, 10
      %s23 = sphi 0, %s25
      %s26 = sphi 0, %s23
      %s27 = sphi 0, %s26
      %s43 = sphi 0, %s27
      %s49 = sphi 0, %s51
      %s52 = sphi 0, %s49
      %s53 = sphi 0, %s52
      %s69 = sphi 0, %s53
    $region4: #{tpu_custom_call.1} parent=1 // loop_header_branch
      %16 = sbr.rel (%p14) target = $region8
    $region5: #{tpu_custom_call.1} parent=1 // loop_body
      %s18 = ssub.s32 %s13, 1
      %s19 = ssub.s32 %s13, 2
      %s20 = sadd.s32 %s13, 1
      %s21 = ssub.s32 %s13, %s20
      %p22 = scmp.eq.s32.totalorder %s21, 0
      %s24 = sadd.s32 %s23, 1
      %s25 = scalar_select %p22, %s23, %s24
      %p28 = pneg %p22
      %p29 = scmp.eq.s32.totalorder %s13, 7
      %p30 = por %p28, %p29
      %p31 = scmp.ne.s32.totalorder %s23, %s26
      %p32 = scmp.eq.s32.totalorder %s13, 0
      %p33 = por %p31, %p32
      %p34 = scmp.ne.s32.totalorder %s23, %s26
      %p35 = scmp.eq.s32.totalorder %s18, 7
      %p36 = por %p34, %p35
      %p37 = scmp.ne.s32.totalorder %s26, %s27
      %p38 = scmp.eq.s32.totalorder %s18, 0
      %p39 = por %p37, %p38
      %p40 = scmp.ne.s32.totalorder %s26, %s27
      %p41 = scmp.eq.s32.totalorder %s19, 7
      %p42 = por %p40, %p41
      %p44 = scmp.ne.s32.totalorder %s27, %s43
      %p45 = scmp.eq.s32.totalorder %s19, 0
      %p46 = por %p44, %p45
      %s47 = ssub.s32 %s13, %s20
      %p48 = scmp.eq.s32.totalorder %s47, 0
      %s50 = sadd.s32 %s49, 1
      %s51 = scalar_select %p48, %s49, %s50
      %p54 = pneg %p48
      %p55 = scmp.eq.s32.totalorder %s13, 7
      %p56 = por %p54, %p55
      %p57 = scmp.ne.s32.totalorder %s49, %s52
      %p58 = scmp.eq.s32.totalorder %s13, 0
      %p59 = por %p57, %p58
      %p60 = scmp.ne.s32.totalorder %s49, %s52
      %p61 = scmp.eq.s32.totalorder %s18, 7
      %p62 = por %p60, %p61
      %p63 = scmp.ne.s32.totalorder %s52, %s53
      %p64 = scmp.eq.s32.totalorder %s18, 0
      %p65 = por %p63, %p64
      %p66 = scmp.ne.s32.totalorder %s52, %s53
      %p67 = scmp.eq.s32.totalorder %s19, 7
      %p68 = por %p66, %p67
      %p70 = scmp.ne.s32.totalorder %s53, %s69
      %p71 = scmp.eq.s32.totalorder %s19, 0
      %p72 = por %p70, %p71
      %p73 = scmp.le.s32.totalorder 1, %s13
      %p74 = scmp.lt.s32.totalorder %s13, 9
      %p75 = pnand %p73, %p74
      %p76 = pneg %p75
      // Predicated region
      $region9: #{tpu_custom_call.1} parent=5 // pred_check
        _
      $region10: #{tpu_custom_call.1} parent=5 // pred_check_branch
        %78 = sbr.rel (%p75) target = $region12
      $region11: #{tpu_custom_call.1} parent=5 // pred_region
        %s79 = ssub.s32 %s13, 1
      $region12: #{tpu_custom_call.1} parent=5 // pred_fallthru
        _
      %p80 = scmp.lt.s32.totalorder %s13, 8
      // Predicated region
      $region13: #{tpu_custom_call.1} parent=5 // pred_check
        %p81 = pneg %p80
      $region14: #{tpu_custom_call.1} parent=5 // pred_check_branch
        %83 = sbr.rel (%p81) target = $region16
      $region15: #{tpu_custom_call.1} parent=5 // pred_region
        // Predicated region
        $region17: #{tpu_custom_call.1} parent=15 // pred_check
          %p84 = pneg %p33
        $region18: #{tpu_custom_call.1} parent=15 // pred_check_branch
          %86 = sbr.rel (%p84) target = $region20
        $region19: #{tpu_custom_call.1} parent=15 // pred_region
          %s87 = sand.u32 %s23, 1
          %s88 = scalar_lea.sflag [#allocation3], %s87
          %s89 = sand.u32 %s23, 1
          %s90 = smul.addr %s89, 512
          %s91 = scalar_lea.vmem [#allocation2], %s90
          %s93 = ssub.s32 8192, 8192
          %94 = vsyncadd %s88, %s93
          %s95 = smul.addr %s13, 64
          %s96 = smul.addr %s95, 128
          %s97 = scalar_lea.hbm %s0, %s96
          %s98 = sshll.u32 %s91, 4
          %s99 = int_to_ptr.vmem [resolvable:$true] %s98
          %104 = dma.hbm_to_vmem [thread:$0]  %s97, 8192, %s99, %s88, 128, 128, 8
        $region20: #{tpu_custom_call.1} parent=15 // pred_fallthru
          _
      $region16: #{tpu_custom_call.1} parent=5 // pred_fallthru
        _
      %p105 = scmp.le.s32.totalorder 1, %s13
      %p106 = scmp.lt.s32.totalorder %s13, 9
      %p107 = pnand %p105, %p106
      %p108 = pneg %p107
      // Predicated region
      $region21: #{tpu_custom_call.1} parent=5 // pred_check
        _
      $region22: #{tpu_custom_call.1} parent=5 // pred_check_branch
        %110 = sbr.rel (%p107) target = $region24
      $region23: #{tpu_custom_call.1} parent=5 // pred_region
        %s111 = ssub.s32 %s13, 1
        %s112 = sand.u32 %s26, 1
        %s113 = scalar_lea.sflag [#allocation3], %s112
        %s114 = sand.u32 %s26, 1
        %s115 = smul.addr %s114, 512
        %s116 = scalar_lea.vmem [#allocation2], %s115
        // Predicated region
        $region25: #{tpu_custom_call.1} parent=23 // pred_check
          %p117 = pneg %p39
        $region26: #{tpu_custom_call.1} parent=23 // pred_check_branch
          %119 = sbr.rel (%p117) target = $region28
        $region27: #{tpu_custom_call.1} parent=23 // pred_region
          %120 = dma.done %s113, 8192
        $region28: #{tpu_custom_call.1} parent=23 // pred_fallthru
          _
        %s121 = sand.u32 %s26, 1
        %s122 = scalar_lea.sflag [#allocation3], %s121
        %s123 = sand.u32 %s26, 1
        %s124 = smul.addr %s123, 512
        %s125 = scalar_lea.vmem [#allocation2], %s124
        %p126 = pneg %p39
        %p127 = pneg %p36
        %p128 = pneg %p65
        %p129 = pneg %p62
        %s130 = sand.u32 %s52, 1
        %s131 = scalar_lea.sflag [#allocation4], %s130
        %s132 = sand.u32 %s52, 1
        %s133 = smul.addr %s132, 64
        %s134 = scalar_lea.vmem [#allocation5], %s133
        %v135 = vld [vmem:[%s116] sm:$0xff]
        %v136 = vld [vmem:[%s116 + $0x20] sm:$0xff]
        %v137 = vld [vmem:[%s116 + $0x40] sm:$0xff]
        %v138 = vld [vmem:[%s116 + $0x60] sm:$0xff]
        %v139 = vld [vmem:[%s116 + $0x80] sm:$0xff]
        %v140 = vld [vmem:[%s116 + $0xa0] sm:$0xff]
        %v141 = vld [vmem:[%s116 + $0xc0] sm:$0xff]
        %v142 = vld [vmem:[%s116 + $0xe0] sm:$0xff]
        %s143 = scalar_lea.vmem %s116, 8 [#allocation2]
        %v144 = vld [vmem:[%s143] sm:$0xff]
        %v145 = vld [vmem:[%s143 + $0x20] sm:$0xff]
        %v146 = vld [vmem:[%s143 + $0x40] sm:$0xff]
        %v147 = vld [vmem:[%s143 + $0x60] sm:$0xff]
        %v148 = vld [vmem:[%s143 + $0x80] sm:$0xff]
        %v149 = vld [vmem:[%s143 + $0xa0] sm:$0xff]
        %v150 = vld [vmem:[%s143 + $0xc0] sm:$0xff]
        %v151 = vld [vmem:[%s143 + $0xe0] sm:$0xff]
        %v152 = vmax.f32 %v135, %v144
        %v153 = vmax.f32 %v136, %v145
        %v154 = vmax.f32 %v137, %v146
        %v155 = vmax.f32 %v138, %v147
        %v156 = vmax.f32 %v139, %v148
        %v157 = vmax.f32 %v140, %v149
        %v158 = vmax.f32 %v141, %v150
        %v159 = vmax.f32 %v142, %v151
        %s160 = scalar_lea.vmem %s116, 16 [#allocation2]
        %v161 = vld [vmem:[%s160] sm:$0xff]
        %v162 = vld [vmem:[%s160 + $0x20] sm:$0xff]
        %v163 = vld [vmem:[%s160 + $0x40] sm:$0xff]
        %v164 = vld [vmem:[%s160 + $0x60] sm:$0xff]
        %v165 = vld [vmem:[%s160 + $0x80] sm:$0xff]
        %v166 = vld [vmem:[%s160 + $0xa0] sm:$0xff]
        %v167 = vld [vmem:[%s160 + $0xc0] sm:$0xff]
        %v168 = vld [vmem:[%s160 + $0xe0] sm:$0xff]
        %v169 = vmax.f32 %v152, %v161
        %v170 = vmax.f32 %v153, %v162
        %v171 = vmax.f32 %v154, %v163
        %v172 = vmax.f32 %v155, %v164
        %v173 = vmax.f32 %v156, %v165
        %v174 = vmax.f32 %v157, %v166
        %v175 = vmax.f32 %v158, %v167
        %v176 = vmax.f32 %v159, %v168
        %s177 = scalar_lea.vmem %s116, 24 [#allocation2]
        %v178 = vld [vmem:[%s177] sm:$0xff]
        %v179 = vld [vmem:[%s177 + $0x20] sm:$0xff]
        %v180 = vld [vmem:[%s177 + $0x40] sm:$0xff]
        %v181 = vld [vmem:[%s177 + $0x60] sm:$0xff]
        %v182 = vld [vmem:[%s177 + $0x80] sm:$0xff]
        %v183 = vld [vmem:[%s177 + $0xa0] sm:$0xff]
        %v184 = vld [vmem:[%s177 + $0xc0] sm:$0xff]
        %v185 = vld [vmem:[%s177 + $0xe0] sm:$0xff]
        %v186 = vmax.f32 %v169, %v178
        %v187 = vmax.f32 %v170, %v179
        %v188 = vmax.f32 %v171, %v180
        %v189 = vmax.f32 %v172, %v181
        %v190 = vmax.f32 %v173, %v182
        %v191 = vmax.f32 %v174, %v183
        %v192 = vmax.f32 %v175, %v184
        %v193 = vmax.f32 %v176, %v185
        %s194 = scalar_lea.vmem %s116, 256 [#allocation2]
        %v195 = vld [vmem:[%s194] sm:$0xff]
        %v196 = vld [vmem:[%s194 + $0x20] sm:$0xff]
        %v197 = vld [vmem:[%s194 + $0x40] sm:$0xff]
        %v198 = vld [vmem:[%s194 + $0x60] sm:$0xff]
        %v199 = vld [vmem:[%s194 + $0x80] sm:$0xff]
        %v200 = vld [vmem:[%s194 + $0xa0] sm:$0xff]
        %v201 = vld [vmem:[%s194 + $0xc0] sm:$0xff]
        %v202 = vld [vmem:[%s194 + $0xe0] sm:$0xff]
        %v203 = vmax.f32 %v186, %v195
        %v204 = vmax.f32 %v187, %v196
        %v205 = vmax.f32 %v188, %v197
        %v206 = vmax.f32 %v189, %v198
        %v207 = vmax.f32 %v190, %v199
        %v208 = vmax.f32 %v191, %v200
        %v209 = vmax.f32 %v192, %v201
        %v210 = vmax.f32 %v193, %v202
        %s211 = scalar_lea.vmem %s116, 264 [#allocation2]
        %v212 = vld [vmem:[%s211] sm:$0xff]
        %v213 = vld [vmem:[%s211 + $0x20] sm:$0xff]
        %v214 = vld [vmem:[%s211 + $0x40] sm:$0xff]
        %v215 = vld [vmem:[%s211 + $0x60] sm:$0xff]
        %v216 = vld [vmem:[%s211 + $0x80] sm:$0xff]
        %v217 = vld [vmem:[%s211 + $0xa0] sm:$0xff]
        %v218 = vld [vmem:[%s211 + $0xc0] sm:$0xff]
        %v219 = vld [vmem:[%s211 + $0xe0] sm:$0xff]
        %v220 = vmax.f32 %v203, %v212
        %v221 = vmax.f32 %v204, %v213
        %v222 = vmax.f32 %v205, %v214
        %v223 = vmax.f32 %v206, %v215
        %v224 = vmax.f32 %v207, %v216
        %v225 = vmax.f32 %v208, %v217
        %v226 = vmax.f32 %v209, %v218
        %v227 = vmax.f32 %v210, %v219
        %s228 = scalar_lea.vmem %s116, 272 [#allocation2]
        %v229 = vld [vmem:[%s228] sm:$0xff]
        %v230 = vld [vmem:[%s228 + $0x20] sm:$0xff]
        %v231 = vld [vmem:[%s228 + $0x40] sm:$0xff]
        %v232 = vld [vmem:[%s228 + $0x60] sm:$0xff]
        %v233 = vld [vmem:[%s228 + $0x80] sm:$0xff]
        %v234 = vld [vmem:[%s228 + $0xa0] sm:$0xff]
        %v235 = vld [vmem:[%s228 + $0xc0] sm:$0xff]
        %v236 = vld [vmem:[%s228 + $0xe0] sm:$0xff]
        %v237 = vmax.f32 %v220, %v229
        %v238 = vmax.f32 %v221, %v230
        %v239 = vmax.f32 %v222, %v231
        %v240 = vmax.f32 %v223, %v232
        %v241 = vmax.f32 %v224, %v233
        %v242 = vmax.f32 %v225, %v234
        %v243 = vmax.f32 %v226, %v235
        %v244 = vmax.f32 %v227, %v236
        %s245 = scalar_lea.vmem %s116, 280 [#allocation2]
        %v246 = vld [vmem:[%s245] sm:$0xff]
        %v247 = vld [vmem:[%s245 + $0x20] sm:$0xff]
        %v248 = vld [vmem:[%s245 + $0x40] sm:$0xff]
        %v249 = vld [vmem:[%s245 + $0x60] sm:$0xff]
        %v250 = vld [vmem:[%s245 + $0x80] sm:$0xff]
        %v251 = vld [vmem:[%s245 + $0xa0] sm:$0xff]
        %v252 = vld [vmem:[%s245 + $0xc0] sm:$0xff]
        %v253 = vld [vmem:[%s245 + $0xe0] sm:$0xff]
        %v254 = vmax.f32 %v237, %v246
        %v255 = vmax.f32 %v238, %v247
        %v256 = vmax.f32 %v239, %v248
        %v257 = vmax.f32 %v240, %v249
        %v258 = vmax.f32 %v241, %v250
        %v259 = vmax.f32 %v242, %v251
        %v260 = vmax.f32 %v243, %v252
        %v261 = vmax.f32 %v244, %v253
        %vm262 = vcmask 64512
        %263 = vst.msk [vmem:[%s134] sm:$0xff] %vm262, %v254
        %264 = vst.msk [vmem:[%s134 + $0x8] sm:$0xff] %vm262, %v255
        %265 = vst.msk [vmem:[%s134 + $0x10] sm:$0xff] %vm262, %v256
        %266 = vst.msk [vmem:[%s134 + $0x18] sm:$0xff] %vm262, %v257
        %267 = vst.msk [vmem:[%s134 + $0x20] sm:$0xff] %vm262, %v258
        %268 = vst.msk [vmem:[%s134 + $0x28] sm:$0xff] %vm262, %v259
        %269 = vst.msk [vmem:[%s134 + $0x30] sm:$0xff] %vm262, %v260
        %270 = vst.msk [vmem:[%s134 + $0x38] sm:$0xff] %vm262, %v261
        %s271 = sand.u32 %s52, 1
        %s272 = scalar_lea.sflag [#allocation4], %s271
        %s273 = sand.u32 %s52, 1
        %s274 = smul.addr %s273, 64
        %s275 = scalar_lea.vmem [#allocation5], %s274
        // Predicated region
        $region29: #{tpu_custom_call.1} parent=23 // pred_check
          %p276 = pneg %p62
        $region30: #{tpu_custom_call.1} parent=23 // pred_check_branch
          %278 = sbr.rel (%p276) target = $region32
        $region31: #{tpu_custom_call.1} parent=23 // pred_region
          %s280 = ssub.s32 1024, 1024
          %281 = vsyncadd %s272, %s280
          %s282 = smul.addr %s18, 8
          %s283 = smul.addr %s282, 128
          %s284 = scalar_lea.hbm %s1, %s283
          %s285 = sshll.u32 %s275, 4
          %s286 = int_to_ptr.vmem [resolvable:$true] %s285
          %291 = dma.vmem_to_hbm [thread:$0]  %s286, 1024, %s284, %s272, 128, 128, 8
        $region32: #{tpu_custom_call.1} parent=23 // pred_fallthru
          _
      $region24: #{tpu_custom_call.1} parent=5 // pred_fallthru
        _
      %p292 = scmp.le.s32.totalorder 2, %s13
      // Predicated region
      $region33: #{tpu_custom_call.1} parent=5 // pred_check
        %p293 = pneg %p292
      $region34: #{tpu_custom_call.1} parent=5 // pred_check_branch
        %295 = sbr.rel (%p293) target = $region36
      $region35: #{tpu_custom_call.1} parent=5 // pred_region
        %s296 = ssub.s32 %s13, 2
        // Predicated region
        $region37: #{tpu_custom_call.1} parent=35 // pred_check
          %p297 = pneg %p68
        $region38: #{tpu_custom_call.1} parent=35 // pred_check_branch
          %299 = sbr.rel (%p297) target = $region40
        $region39: #{tpu_custom_call.1} parent=35 // pred_region
          %s300 = sand.u32 %s53, 1
          %s301 = scalar_lea.sflag [#allocation4], %s300
          %s302 = sand.u32 %s53, 1
          %s303 = smul.addr %s302, 64
          %s304 = scalar_lea.vmem [#allocation5], %s303
          %305 = dma.done %s301, 1024
        $region40: #{tpu_custom_call.1} parent=35 // pred_fallthru
          _
      $region36: #{tpu_custom_call.1} parent=5 // pred_fallthru
        _
    $region6: #{tpu_custom_call.1} parent=1 // loop_footer
      %s17 = sadd.s32 1, %s13
    $region7: #{tpu_custom_call.1} parent=1 // loop_footer_branch
      %12 = sbr.rel target = $region3
    $region8: #{tpu_custom_call.1} parent=1 // loop_exit
      _
    %306 = vsyncpa [#allocation3], 1
    %s307 = scalar_lea.sflag [#allocation3], 1
    %308 = vsyncpa %s307, 1
    %309 = vsyncpa [#allocation4], 1
    %s310 = scalar_lea.sflag [#allocation4], 1
    %311 = vsyncpa %s310, 1

</llo_original>
